<compile_context>
chip_gen: v7x
topology: tpu7x:2x2x1
jax: 0.10.0
libtpu: 0.0.40
codegen_flags: <defaults>
</compile_context>

<pallas_src>
import jax
import jax.numpy as jnp
from jax.experimental import pallas as pl
from jax.experimental.pallas import tpu as pltpu

PACK = 8            # samples packed per row: 8 * 14 features = 112 lanes (one lane-row)
MIN_GRID_STEPS = 8  # keep both v7x TensorCores busy and the pipeline overlapping


def _round_up(n, m):
    return ((n + m - 1) // m) * m


def _churn_kernel(xp_ref, w1_ref, b1_ref, w2_ref, b2_ref, w3_ref, b3_ref, o_ref):
    # xp_ref: [tbp, PACK*F]      streamed, double-buffered, lane-dense batch tile
    # w*_ref: 8-way block-diagonal weights (VMEM-resident, constant index maps)
    # b*_ref: [1, PACK*H]        biases tiled PACK times (broadcast over sublanes)
    # o_ref : [tbp, PACK*n_out]  packed sigmoid outputs
    xp = xp_ref[...].astype(jnp.float32)   # upcast in VMEM; input may be bf16

    # Layer 1 (+ ReLU). BN1 is folded into w2/b2.
    h1 = jnp.dot(xp, w1_ref[...], preferred_element_type=jnp.float32) + b1_ref[...]
    h1 = jnp.maximum(h1, 0.0)

    # Layer 2 (+ ReLU). BN2 is folded into w3/b3.
    h2 = jnp.dot(h1, w2_ref[...], preferred_element_type=jnp.float32) + b2_ref[...]
    h2 = jnp.maximum(h2, 0.0)

    # Dropout(p=0.1) == identity in eval mode.
    logits = jnp.dot(h2, w3_ref[...], preferred_element_type=jnp.float32) + b3_ref[...]
    o_ref[...] = jax.nn.sigmoid(logits).astype(o_ref.dtype)


def churn_model_forward(x, params, *, tile_rows=65536, eps=1e-5):
    """x: [B, F] (f32 or bf16); params in PyTorch layout (weights are [out, in])."""
    w1, b1 = params["w1"], params["b1"]          # [H1, F], [H1]
    w2, b2 = params["w2"], params["b2"]          # [H2, H1], [H2]
    w3, b3 = params["w3"], params["b3"]          # [n_out, H2], [n_out]

    B, F = x.shape
    n_out = w3.shape[0]
    f32 = jnp.float32

    # ---- Host-side parameter prep (tiny, one-off) -------------------------------
    # Fold eval-mode BatchNorm1d into the *next* Linear (legal: BN sits between ReLU
    # and the next Linear):  (h*s + t) @ W.T + b  ==  h @ (W*s).T + (b + W @ t).
    s1 = params["bn1_gamma"] / jnp.sqrt(params["bn1_var"] + eps)
    t1 = params["bn1_beta"] - params["bn1_mean"] * s1
    s2 = params["bn2_gamma"] / jnp.sqrt(params["bn2_var"] + eps)
    t2 = params["bn2_beta"] - params["bn2_mean"] * s2
    w2f = w2.astype(f32) * s1[None, :].astype(f32)
    b2f = b2.astype(f32) + w2.astype(f32) @ t1.astype(f32)
    w3f = w3.astype(f32) * s2[None, :].astype(f32)
    b3f = b3.astype(f32) + w3.astype(f32) @ t2.astype(f32)

    # 8-way block-diagonal weights so the whole pipeline runs on the packed
    # [rows, PACK*feat] layout (lane-dense, no transposed dot_general anywhere).
    eye = jnp.eye(PACK, dtype=f32)
    W1 = jnp.kron(eye, w1.astype(f32).T)           # [PACK*F , PACK*H1 ]
    W2 = jnp.kron(eye, w2f.T)                      # [PACK*H1, PACK*H2 ]
    W3 = jnp.kron(eye, w3f.T)                      # [PACK*H2, PACK*nO ]
    B1 = jnp.tile(b1.astype(f32), PACK)[None, :]   # [1, PACK*H1]
    B2 = jnp.tile(b2f, PACK)[None, :]              # [1, PACK*H2]
    B3 = jnp.tile(b3f, PACK)[None, :]              # [1, PACK*nO]

    # ---- Pack 8 samples per row (free row-major view when B % 8 == 0) -----------
    Bp = _round_up(B, PACK)
    if Bp != B:                                    # <= 7 extra rows; NOT a full-tile pad
        x = jnp.pad(x, ((0, Bp - B), (0, 0)))
    rows_p = Bp // PACK
    xp = x.reshape(rows_p, PACK * F)               # keep caller dtype (bf16 stays bf16)

    # ---- Tile / grid selection ---------------------------------------------------
    # Cap by tile_rows (default 65536 rows: ~25-30 MiB double-buffered footprint with
    # the packed layout -> fits v5e/v6e/v7x). For mid-size batches shrink the tile so
    # the grid keeps >= MIN_GRID_STEPS steps instead of collapsing to a single step.
    tbp = min(max(PACK, tile_rows // PACK),
              _round_up(pl.cdiv(rows_p, MIN_GRID_STEPS), 8))
    tbp = min(tbp, rows_p)                         # tiny batches: one full block
    grid = (pl.cdiv(rows_p, tbp),)                 # partial last block: writeback clipped

    def const_spec(a):  # full-array block + constant index map -> DMA'd once, resident
        return pl.BlockSpec(a.shape, lambda i: (0, 0))

    out_p = pl.pallas_call(
        _churn_kernel,
        grid=grid,
        in_specs=[
            # Streamed, lane-dense batch tile. If profiling shows DMA gaps at step
            # boundaries, add pipeline_mode=pl.Buffered(3) here.
            pl.BlockSpec((tbp, PACK * F), lambda i: (i, 0)),
            const_spec(W1), const_spec(B1),
            const_spec(W2), const_spec(B2),
            const_spec(W3), const_spec(B3),
        ],
        out_specs=pl.BlockSpec((tbp, PACK * n_out), lambda i: (i, 0)),
        out_shape=jax.ShapeDtypeStruct((rows_p, PACK * n_out), f32),
        compiler_params=pltpu.CompilerParams(
            dimension_semantics=("parallel",),
            vmem_limit_bytes=48 * 1024 * 1024,   # > v5e's 16 MiB default, < v7x's 64 MiB
        ),
    )(xp, W1, B1, W2, B2, W3, B3)

    # [rows_p, PACK*n_out] row-major == [Bp, n_out]; drop the <= 7 padded rows.
    return out_p.reshape(Bp, n_out)[:B]


def init_params(key, n_in=14, h1=11, h2=5):
    """Deterministic params mimicking nn.Linear default init + BatchNorm running stats."""
    ks = jax.random.split(key, 16)
    u = lambda k, shp, b: jax.random.uniform(k, shp, jnp.float32, -b, b)
    bd1, bd2, bd3 = 1.0 / (n_in ** 0.5), 1.0 / (h1 ** 0.5), 1.0 / (h2 ** 0.5)
    return {
        "w1": u(ks[0], (h1, n_in), bd1), "b1": u(ks[1], (h1,), bd1),
        "w2": u(ks[2], (h2, h1), bd2),   "b2": u(ks[3], (h2,), bd2),
        "w3": u(ks[4], (1, h2), bd3),    "b3": u(ks[5], (1,), bd3),
        "bn1_gamma": 1.0 + 0.1 * jax.random.normal(ks[6], (h1,), jnp.float32),
        "bn1_beta": 0.1 * jax.random.normal(ks[7], (h1,), jnp.float32),
        "bn1_mean": 0.1 * jax.random.normal(ks[8], (h1,), jnp.float32),
        "bn1_var": jax.random.uniform(ks[9], (h1,), jnp.float32, 0.5, 1.5),
        "bn2_gamma": 1.0 + 0.1 * jax.random.normal(ks[10], (h2,), jnp.float32),
        "bn2_beta": 0.1 * jax.random.normal(ks[11], (h2,), jnp.float32),
        "bn2_mean": 0.1 * jax.random.normal(ks[12], (h2,), jnp.float32),
        "bn2_var": jax.random.uniform(ks[13], (h2,), jnp.float32, 0.5, 1.5),
    }


def reference_forward(x, p, eps=1e-5):
    """Pure-JAX eval-mode reference (mirrors the PyTorch module in eval())."""
    h = jnp.maximum(x @ p["w1"].T + p["b1"], 0.0)
    h = (h - p["bn1_mean"]) / jnp.sqrt(p["bn1_var"] + eps) * p["bn1_gamma"] + p["bn1_beta"]
    h = jnp.maximum(h @ p["w2"].T + p["b2"], 0.0)
    h = (h - p["bn2_mean"]) / jnp.sqrt(p["bn2_var"] + eps) * p["bn2_gamma"] + p["bn2_beta"]
    # dropout (eval) == identity
    return jax.nn.sigmoid(h @ p["w3"].T + p["b3"])


if __name__ == "__main__":
    key = jax.random.PRNGKey(0)
    kx1, kx2, kx3, kp = jax.random.split(key, 4)

    F = 14
    params = init_params(kp, n_in=F, h1=11, h2=5)

    # 1) Small batch: exercises the <=7-row packing pad and a single partial block.
    x_small = jax.random.normal(kx1, (37, F), jnp.float32)
    out_small = jax.block_until_ready(churn_model_forward(x_small, params))
    ref_small = reference_forward(x_small, params)
    assert out_small.shape == (37, 1)
    assert jnp.allclose(out_small, ref_small, atol=2e-5, rtol=1e-5)

    # 2) Larger batch: multi-step grid (>= MIN_GRID_STEPS), no pad (B % 8 == 0),
    #    partial final block clipped by Pallas.
    x_big = jax.random.normal(kx2, (1000, F), jnp.float32)
    out_big = jax.block_until_ready(churn_model_forward(x_big, params))
    ref_big = reference_forward(x_big, params)
    assert out_big.shape == (1000, 1)
    assert jnp.allclose(out_big, ref_big, atol=2e-5, rtol=1e-5)

    # 3) bf16 input produced by the caller (no wrapper-side cast): halves HBM x read.
    x_bf = jax.random.normal(kx3, (1024, F), jnp.float32).astype(jnp.bfloat16)
    out_bf = jax.block_until_ready(churn_model_forward(x_bf, params))
    ref_bf = reference_forward(x_bf.astype(jnp.float32), params)
    assert out_bf.shape == (1024, 1)
    assert jnp.allclose(out_bf, ref_bf, atol=2e-5, rtol=1e-5)

    print("KERNEL_OK")
</pallas_src>

<mosaic_0001>
module attributes {stable_mosaic.version = 11 : i64} {
  func.func @_churn_kernel(%arg0: i32, %arg1: memref<5x112xf32, #tpu.memory_space<vmem>>, %arg2: memref<112x88xf32, #tpu.memory_space<vmem>>, %arg3: memref<1x88xf32, #tpu.memory_space<vmem>>, %arg4: memref<88x40xf32, #tpu.memory_space<vmem>>, %arg5: memref<1x40xf32, #tpu.memory_space<vmem>>, %arg6: memref<40x8xf32, #tpu.memory_space<vmem>>, %arg7: memref<1x8xf32, #tpu.memory_space<vmem>>, %arg8: memref<5x8xf32, #tpu.memory_space<vmem>>) attributes {dimension_semantics = [#tpu.dimension_semantics<parallel>], iteration_bounds = array<i64: 1>, scalar_prefetch = 0 : i64, scratch_operands = 0 : i64, tpu.core_type = #tpu.core_type<tc>, window_params = [{transform_indices = @transform_0, window_bounds = array<i64: 5, 112>}, {pipeline_mode = #tpu.pipeline_mode<synchronous>, transform_indices = @transform_1, window_bounds = array<i64: 112, 88>}, {pipeline_mode = #tpu.pipeline_mode<synchronous>, transform_indices = @transform_2, window_bounds = array<i64: 1, 88>}, {pipeline_mode = #tpu.pipeline_mode<synchronous>, transform_indices = @transform_3, window_bounds = array<i64: 88, 40>}, {pipeline_mode = #tpu.pipeline_mode<synchronous>, transform_indices = @transform_4, window_bounds = array<i64: 1, 40>}, {pipeline_mode = #tpu.pipeline_mode<synchronous>, transform_indices = @transform_5, window_bounds = array<i64: 40, 8>}, {pipeline_mode = #tpu.pipeline_mode<synchronous>, transform_indices = @transform_6, window_bounds = array<i64: 1, 8>}, {transform_indices = @transform_7, window_bounds = array<i64: 5, 8>}]} {
    %c0 = arith.constant 0 : index
    %c0_0 = arith.constant 0 : index
    %0 = vector.load %arg1[%c0, %c0_0] : memref<5x112xf32, #tpu.memory_space<vmem>>, vector<5x112xf32>
    %c0_1 = arith.constant 0 : index
    %c0_2 = arith.constant 0 : index
    %1 = vector.load %arg2[%c0_1, %c0_2] : memref<112x88xf32, #tpu.memory_space<vmem>>, vector<112x88xf32>
    %cst = arith.constant dense<0.000000e+00> : vector<5x88xf32>
    %2 = tpu.matmul %0, %1, %cst {dimension_numbers = #tpu.dot_dimension_numbers<[1], [0], [0], [1], [0, 0, 1, 1], [], []>} : vector<5x112xf32>, vector<112x88xf32>, vector<5x88xf32> -> vector<5x88xf32>
    %c0_3 = arith.constant 0 : index
    %c0_4 = arith.constant 0 : index
    %3 = vector.load %arg3[%c0_3, %c0_4] : memref<1x88xf32, #tpu.memory_space<vmem>>, vector<1x88xf32>
    %4 = vector.broadcast %3 : vector<1x88xf32> to vector<5x88xf32>
    %5 = arith.addf %2, %4 : vector<5x88xf32>
    %cst_5 = arith.constant 0.000000e+00 : f32
    %6 = vector.broadcast %cst_5 : f32 to vector<5x88xf32>
    %7 = arith.maximumf %5, %6 : vector<5x88xf32>
    %c0_6 = arith.constant 0 : index
    %c0_7 = arith.constant 0 : index
    %8 = vector.load %arg4[%c0_6, %c0_7] : memref<88x40xf32, #tpu.memory_space<vmem>>, vector<88x40xf32>
    %cst_8 = arith.constant dense<0.000000e+00> : vector<5x40xf32>
    %9 = tpu.matmul %7, %8, %cst_8 {dimension_numbers = #tpu.dot_dimension_numbers<[1], [0], [0], [1], [0, 0, 1, 1], [], []>} : vector<5x88xf32>, vector<88x40xf32>, vector<5x40xf32> -> vector<5x40xf32>
    %c0_9 = arith.constant 0 : index
    %c0_10 = arith.constant 0 : index
    %10 = vector.load %arg5[%c0_9, %c0_10] : memref<1x40xf32, #tpu.memory_space<vmem>>, vector<1x40xf32>
    %11 = vector.broadcast %10 : vector<1x40xf32> to vector<5x40xf32>
    %12 = arith.addf %9, %11 : vector<5x40xf32>
    %cst_11 = arith.constant 0.000000e+00 : f32
    %13 = vector.broadcast %cst_11 : f32 to vector<5x40xf32>
    %14 = arith.maximumf %12, %13 : vector<5x40xf32>
    %c0_12 = arith.constant 0 : index
    %c0_13 = arith.constant 0 : index
    %15 = vector.load %arg6[%c0_12, %c0_13] : memref<40x8xf32, #tpu.memory_space<vmem>>, vector<40x8xf32>
    %cst_14 = arith.constant dense<0.000000e+00> : vector<5x8xf32>
    %16 = tpu.matmul %14, %15, %cst_14 {dimension_numbers = #tpu.dot_dimension_numbers<[1], [0], [0], [1], [0, 0, 1, 1], [], []>} : vector<5x40xf32>, vector<40x8xf32>, vector<5x8xf32> -> vector<5x8xf32>
    %c0_15 = arith.constant 0 : index
    %c0_16 = arith.constant 0 : index
    %17 = vector.load %arg7[%c0_15, %c0_16] : memref<1x8xf32, #tpu.memory_space<vmem>>, vector<1x8xf32>
    %18 = vector.broadcast %17 : vector<1x8xf32> to vector<5x8xf32>
    %19 = arith.addf %16, %18 : vector<5x8xf32>
    %20 = arith.negf %19 : vector<5x8xf32>
    %21 = math.exp %20 : vector<5x8xf32>
    %cst_17 = arith.constant 1.000000e+00 : f32
    %22 = vector.broadcast %cst_17 : f32 to vector<5x8xf32>
    %23 = arith.addf %22, %21 : vector<5x8xf32>
    %24 = arith.divf %22, %23 : vector<5x8xf32>
    %c0_18 = arith.constant 0 : index
    %c0_19 = arith.constant 0 : index
    %25 = vector.load %arg8[%c0_18, %c0_19] : memref<5x8xf32, #tpu.memory_space<vmem>>, vector<5x8xf32>
    tpu.vector_store %arg8[%c0_18, %c0_19], %24 {strides = array<i32>} : memref<5x8xf32, #tpu.memory_space<vmem>>, vector<5x8xf32>,
    return
  }
  func.func @transform_0(%arg0: i32) -> (i32, i32) {
    %c0_i32 = arith.constant 0 : i32
    %c0_i32_0 = arith.constant 0 : i32
    return %arg0, %c0_i32 : i32, i32
  }
  func.func @transform_1(%arg0: i32) -> (i32, i32) {
    %c0_i32 = arith.constant 0 : i32
    %c0_i32_0 = arith.constant 0 : i32
    %c0_i32_1 = arith.constant 0 : i32
    return %c0_i32, %c0_i32_0 : i32, i32
  }
  func.func @transform_2(%arg0: i32) -> (i32, i32) {
    %c0_i32 = arith.constant 0 : i32
    %c0_i32_0 = arith.constant 0 : i32
    %c0_i32_1 = arith.constant 0 : i32
    return %c0_i32, %c0_i32_0 : i32, i32
  }
  func.func @transform_3(%arg0: i32) -> (i32, i32) {
    %c0_i32 = arith.constant 0 : i32
    %c0_i32_0 = arith.constant 0 : i32
    %c0_i32_1 = arith.constant 0 : i32
    return %c0_i32, %c0_i32_0 : i32, i32
  }
  func.func @transform_4(%arg0: i32) -> (i32, i32) {
    %c0_i32 = arith.constant 0 : i32
    %c0_i32_0 = arith.constant 0 : i32
    %c0_i32_1 = arith.constant 0 : i32
    return %c0_i32, %c0_i32_0 : i32, i32
  }
  func.func @transform_5(%arg0: i32) -> (i32, i32) {
    %c0_i32 = arith.constant 0 : i32
    %c0_i32_0 = arith.constant 0 : i32
    %c0_i32_1 = arith.constant 0 : i32
    return %c0_i32, %c0_i32_0 : i32, i32
  }
  func.func @transform_6(%arg0: i32) -> (i32, i32) {
    %c0_i32 = arith.constant 0 : i32
    %c0_i32_0 = arith.constant 0 : i32
    %c0_i32_1 = arith.constant 0 : i32
    return %c0_i32, %c0_i32_0 : i32, i32
  }
  func.func @transform_7(%arg0: i32) -> (i32, i32) {
    %c0_i32 = arith.constant 0 : i32
    %c0_i32_0 = arith.constant 0 : i32
    return %arg0, %c0_i32 : i32, i32
  }
}

</mosaic_0001>

<llo_original>
// kernel: tpu_custom_call.1
$region0: #{tpu_custom_call.1}
  #allocation0 [shape = 'u32[]', space=smem, size = 0x4, offset = 0x4, fixed_abs, tag = 'smem constant byte address 0x4 - core index']
  #allocation1 [shape = 'u32[144,128]{1,0:T(1,128)}', space=vmem, size = 0x12000, scoped, tag = 'internal scratch']
  %s0 = inlined_call_operand.vmem [shape: f32[5,112], index: 0, kind: input, shape index: {}]
  %s1 = inlined_call_operand.vmem [shape: f32[112,88], index: 1, kind: input, shape index: {}]
  %s2 = inlined_call_operand.vmem [shape: f32[1,88], index: 2, kind: input, shape index: {}]
  %s3 = inlined_call_operand.vmem [shape: f32[88,40], index: 3, kind: input, shape index: {}]
  %s4 = inlined_call_operand.vmem [shape: f32[1,40], index: 4, kind: input, shape index: {}]
  %s5 = inlined_call_operand.vmem [shape: f32[40,8], index: 5, kind: input, shape index: {}]
  %s6 = inlined_call_operand.vmem [shape: f32[1,8], index: 6, kind: input, shape index: {}]
  %s7 = inlined_call_operand.hbm [shape: f32[5,8], index: 7, kind: output, shape index: {}]
  %s8 = sld [smem:[#allocation0]]
  $region38: #{tpu_custom_call.1} parent=0
    _
  %s10 = ssub.s32 1, %s8
  %s11 = scalar_select 0, %s10, %s8
  $region1: #{tpu_custom_call.1} parent=0
    #allocation2 [shape = 'u8[4096]{0}', space=vmem, size = 0x1000, scoped, tag = 'output window, operand 0, single buffered']
    #allocation3 [shape = 's32[1]{0}', space=sflag, size = 0x4, scoped, tag = 'scoped memory for tpu_custom_call.1']
    %12 = vsyncpa [#allocation3], 0
    // Predicated region
    $region2: #{tpu_custom_call.1} parent=1 // pred_check
      _
    $region3: #{tpu_custom_call.1} parent=1 // pred_check_branch
      %14 = sbr.rel (0) target = $region5
    $region4: #{tpu_custom_call.1} parent=1 // pred_region
      _
    $region5: #{tpu_custom_call.1} parent=1 // pred_fallthru
      _
    // Predicated region
    $region6: #{tpu_custom_call.1} parent=1 // pred_check
      _
    $region7: #{tpu_custom_call.1} parent=1 // pred_check_branch
      %16 = sbr.rel (0) target = $region9
    $region8: #{tpu_custom_call.1} parent=1 // pred_region
      _
    $region9: #{tpu_custom_call.1} parent=1 // pred_fallthru
      _
    // Predicated region
    $region10: #{tpu_custom_call.1} parent=1 // pred_check
      _
    $region11: #{tpu_custom_call.1} parent=1 // pred_check_branch
      %18 = sbr.rel (0) target = $region13
    $region12: #{tpu_custom_call.1} parent=1 // pred_region
      _
    $region13: #{tpu_custom_call.1} parent=1 // pred_fallthru
      _
    // Predicated region
    $region14: #{tpu_custom_call.1} parent=1 // pred_check
      _
    $region15: #{tpu_custom_call.1} parent=1 // pred_check_branch
      %20 = sbr.rel (0) target = $region17
    $region16: #{tpu_custom_call.1} parent=1 // pred_region
      _
    $region17: #{tpu_custom_call.1} parent=1 // pred_fallthru
      _
    // Predicated region
    $region18: #{tpu_custom_call.1} parent=1 // pred_check
      _
    $region19: #{tpu_custom_call.1} parent=1 // pred_check_branch
      %22 = sbr.rel (0) target = $region21
    $region20: #{tpu_custom_call.1} parent=1 // pred_region
      _
    $region21: #{tpu_custom_call.1} parent=1 // pred_fallthru
      _
    // Predicated region
    $region22: #{tpu_custom_call.1} parent=1 // pred_check
      _
    $region23: #{tpu_custom_call.1} parent=1 // pred_check_branch
      %24 = sbr.rel (0) target = $region25
    $region24: #{tpu_custom_call.1} parent=1 // pred_region
      _
    $region25: #{tpu_custom_call.1} parent=1 // pred_fallthru
      _
    // Predicated region
    $region26: #{tpu_custom_call.1} parent=1 // pred_check
      _
    $region27: #{tpu_custom_call.1} parent=1 // pred_check_branch
      %26 = sbr.rel (0) target = $region29
    $region28: #{tpu_custom_call.1} parent=1 // pred_region
      _
    $region29: #{tpu_custom_call.1} parent=1 // pred_fallthru
      _
    %v27 = vld [vmem:[%s0] sm:$0x1f]
    %v28 = vld [vmem:[%s1] sm:$0xff]
    %v29 = vld [vmem:[%s1 + $0x8] sm:$0xff]
    %v30 = vld [vmem:[%s1 + $0x10] sm:$0xff]
    %v31 = vld [vmem:[%s1 + $0x18] sm:$0xff]
    %v32 = vld [vmem:[%s1 + $0x20] sm:$0xff]
    %v33 = vld [vmem:[%s1 + $0x28] sm:$0xff]
    %v34 = vld [vmem:[%s1 + $0x30] sm:$0xff]
    %v35 = vld [vmem:[%s1 + $0x38] sm:$0xff]
    %v36 = vld [vmem:[%s1 + $0x40] sm:$0xff]
    %v37 = vld [vmem:[%s1 + $0x48] sm:$0xff]
    %v38 = vld [vmem:[%s1 + $0x50] sm:$0xff]
    %v39 = vld [vmem:[%s1 + $0x58] sm:$0xff]
    %v40 = vld [vmem:[%s1 + $0x60] sm:$0xff]
    %v41 = vld [vmem:[%s1 + $0x68] sm:$0xff]
    %v42 = vld [vmem:[%s2] sm:$0x1]
    %v44 = vlaneseq
    %v45 = vshrl.u32 %v44, 7
    %v46 = vsub.s32 0, %v45
    %v47 = vrot.slane %v42, %v46
    %vm49 = vcmask 916480
    %v51 = vsel %vm49, %v27, 0
    %53 = vmatprep.subr.mxu0 0.0
    %54 = vmatpush1.msra.mxu0 %v28
    %55 = vmatprep.subr.mxu0 0.0
    %56 = vmatpush1.msra.mxu0 %v29
    %57 = vmatprep.subr.mxu0 0.0
    %58 = vmatpush1.msra.mxu0 %v30
    %59 = vmatprep.subr.mxu0 0.0
    %60 = vmatpush1.msra.mxu0 %v31
    %61 = vmatprep.subr.mxu0 0.0
    %62 = vmatpush1.msra.mxu0 %v32
    %63 = vmatprep.subr.mxu0 0.0
    %64 = vmatpush1.msra.mxu0 %v33
    %65 = vmatprep.subr.mxu0 0.0
    %66 = vmatpush1.msra.mxu0 %v34
    %67 = vmatprep.subr.mxu0 0.0
    %68 = vmatpush1.msra.mxu0 %v35
    %69 = vmatprep.subr.mxu0 0.0
    %70 = vmatpush1.msra.mxu0 %v36
    %71 = vmatprep.subr.mxu0 0.0
    %72 = vmatpush1.msra.mxu0 %v37
    %73 = vmatprep.subr.mxu0 0.0
    %74 = vmatpush1.msra.mxu0 %v38
    %75 = vmatprep.subr.mxu0 0.0
    %76 = vmatpush1.msra.mxu0 %v39
    %77 = vmatprep.subr.mxu0 0.0
    %78 = vmatpush1.msra.mxu0 %v40
    %79 = vmatprep.subr.mxu0 0.0
    %80 = vmatpush1.msra.mxu0 %v41
    %81 = vmatprep.subr.mxu0 0.0
    %82 = vmatpush1.msra.mxu0 0.0
    %83 = vmatprep.subr.mxu0 0.0
    %84 = vmatpush1.msra.mxu0 0.0
    %85 = vmatprep.subr.mxu0 0.0
    %86 = vmatpush1.msra.mxu0 0.0
    %87 = vmatprep.subr.mxu0 0.0
    %88 = vmatpush1.msra.mxu0 0.0
    %89 = vmatprep.subr.mxu0 0.0
    %90 = vmatpush1.msra.mxu0 0.0
    %91 = vmatprep.subr.mxu0 0.0
    %92 = vmatpush1.msra.mxu0 0.0
    %93 = vmatprep.subr.mxu0 0.0
    %94 = vmatpush1.msra.mxu0 0.0
    %95 = vmatprep.subr.mxu0 0.0
    %96 = vmatpush1.msra.mxu0 0.0
    %97 = vmatprep.subr.mxu0 0.0
    %98 = vmatpush1.msra.mxu0 0.0
    %99 = vmatprep.subr.mxu0 0.0
    %100 = vmatpush1.msra.mxu0 0.0
    %101 = vmatprep.subr.mxu0 0.0
    %102 = vmatpush1.msra.mxu0 0.0
    %103 = vmatprep.subr.mxu0 0.0
    %104 = vmatpush1.msra.mxu0 0.0
    %105 = vmatprep.subr.mxu0 0.0
    %106 = vmatpush1.msra.mxu0 0.0
    %107 = vmatprep.subr.mxu0 0.0
    %108 = vmatpush1.msra.mxu0 0.0
    %109 = vmatprep.subr.mxu0 0.0
    %110 = vmatpush1.msra.mxu0 0.0
    %111 = vmatprep.subr.mxu0 0.0
    %112 = vmatpush1.msra.mxu0 0.0
    %113 = vmatprep.subr.mxu0 0.0
    %114 = vmatpush1.msra.mxu0 0.0
    %115 = vmatprep.subr.mxu0 0.0
    %116 = vmatpush1.msra.mxu0 0.0
    %117 = vmatprep.mubr.f32.mxu0 0.0
    %118 = vmatmul.mubr.f32.gmra.mrb[0].mxu0 %v51
    %v119 = vpop.f32.mrb[0].mxu0
    %v120 = vadd.f32 %v47, %v119
    %v121 = vpop.f32.mrb[0].mxu0
    %122 = vdwg.mxu0
    %v123 = vmax.f32 %v120, 0.0
    %v124 = vld [vmem:[%s3] sm:$0xff]
    %v125 = vld [vmem:[%s3 + $0x8] sm:$0xff]
    %v126 = vld [vmem:[%s3 + $0x10] sm:$0xff]
    %v127 = vld [vmem:[%s3 + $0x18] sm:$0xff]
    %v128 = vld [vmem:[%s3 + $0x20] sm:$0xff]
    %v129 = vld [vmem:[%s3 + $0x28] sm:$0xff]
    %v130 = vld [vmem:[%s3 + $0x30] sm:$0xff]
    %v131 = vld [vmem:[%s3 + $0x38] sm:$0xff]
    %v132 = vld [vmem:[%s3 + $0x40] sm:$0xff]
    %v133 = vld [vmem:[%s3 + $0x48] sm:$0xff]
    %v134 = vld [vmem:[%s3 + $0x50] sm:$0xff]
    %v135 = vld [vmem:[%s4] sm:$0x1]
    %v137 = vlaneseq
    %v138 = vshrl.u32 %v137, 7
    %v139 = vsub.s32 0, %v138
    %v140 = vrot.slane %v135, %v139
    %vm142 = vcmask 719872
    %v144 = vsel %vm142, %v123, 0
    %146 = vmatprep.subr.mxu0 0.0
    %147 = vmatpush1.msra.mxu0 %v124
    %148 = vmatprep.subr.mxu0 0.0
    %149 = vmatpush1.msra.mxu0 %v125
    %150 = vmatprep.subr.mxu0 0.0
    %151 = vmatpush1.msra.mxu0 %v126
    %152 = vmatprep.subr.mxu0 0.0
    %153 = vmatpush1.msra.mxu0 %v127
    %154 = vmatprep.subr.mxu0 0.0
    %155 = vmatpush1.msra.mxu0 %v128
    %156 = vmatprep.subr.mxu0 0.0
    %157 = vmatpush1.msra.mxu0 %v129
    %158 = vmatprep.subr.mxu0 0.0
    %159 = vmatpush1.msra.mxu0 %v130
    %160 = vmatprep.subr.mxu0 0.0
    %161 = vmatpush1.msra.mxu0 %v131
    %162 = vmatprep.subr.mxu0 0.0
    %163 = vmatpush1.msra.mxu0 %v132
    %164 = vmatprep.subr.mxu0 0.0
    %165 = vmatpush1.msra.mxu0 %v133
    %166 = vmatprep.subr.mxu0 0.0
    %167 = vmatpush1.msra.mxu0 %v134
    %168 = vmatprep.subr.mxu0 0.0
    %169 = vmatpush1.msra.mxu0 0.0
    %170 = vmatprep.subr.mxu0 0.0
    %171 = vmatpush1.msra.mxu0 0.0
    %172 = vmatprep.subr.mxu0 0.0
    %173 = vmatpush1.msra.mxu0 0.0
    %174 = vmatprep.subr.mxu0 0.0
    %175 = vmatpush1.msra.mxu0 0.0
    %176 = vmatprep.subr.mxu0 0.0
    %177 = vmatpush1.msra.mxu0 0.0
    %178 = vmatprep.subr.mxu0 0.0
    %179 = vmatpush1.msra.mxu0 0.0
    %180 = vmatprep.subr.mxu0 0.0
    %181 = vmatpush1.msra.mxu0 0.0
    %182 = vmatprep.subr.mxu0 0.0
    %183 = vmatpush1.msra.mxu0 0.0
    %184 = vmatprep.subr.mxu0 0.0
    %185 = vmatpush1.msra.mxu0 0.0
    %186 = vmatprep.subr.mxu0 0.0
    %187 = vmatpush1.msra.mxu0 0.0
    %188 = vmatprep.subr.mxu0 0.0
    %189 = vmatpush1.msra.mxu0 0.0
    %190 = vmatprep.subr.mxu0 0.0
    %191 = vmatpush1.msra.mxu0 0.0
    %192 = vmatprep.subr.mxu0 0.0
    %193 = vmatpush1.msra.mxu0 0.0
    %194 = vmatprep.subr.mxu0 0.0
    %195 = vmatpush1.msra.mxu0 0.0
    %196 = vmatprep.subr.mxu0 0.0
    %197 = vmatpush1.msra.mxu0 0.0
    %198 = vmatprep.subr.mxu0 0.0
    %199 = vmatpush1.msra.mxu0 0.0
    %200 = vmatprep.subr.mxu0 0.0
    %201 = vmatpush1.msra.mxu0 0.0
    %202 = vmatprep.subr.mxu0 0.0
    %203 = vmatpush1.msra.mxu0 0.0
    %204 = vmatprep.subr.mxu0 0.0
    %205 = vmatpush1.msra.mxu0 0.0
    %206 = vmatprep.subr.mxu0 0.0
    %207 = vmatpush1.msra.mxu0 0.0
    %208 = vmatprep.subr.mxu0 0.0
    %209 = vmatpush1.msra.mxu0 0.0
    %210 = vmatprep.mubr.f32.mxu0 0.0
    %211 = vmatmul.mubr.f32.gmra.mrb[0].mxu0 %v144
    %v212 = vpop.f32.mrb[0].mxu0
    %v213 = vadd.f32 %v140, %v212
    %v214 = vpop.f32.mrb[0].mxu0
    %215 = vdwg.mxu0
    %v216 = vmax.f32 %v213, 0.0
    %v217 = vld [vmem:[%s5] sm:$0xff]
    %v218 = vld [vmem:[%s5 + $0x8] sm:$0xff]
    %v219 = vld [vmem:[%s5 + $0x10] sm:$0xff]
    %v220 = vld [vmem:[%s5 + $0x18] sm:$0xff]
    %v221 = vld [vmem:[%s5 + $0x20] sm:$0xff]
    %v222 = vld [vmem:[%s6] sm:$0x1]
    %v224 = vlaneseq
    %v225 = vshrl.u32 %v224, 7
    %v226 = vsub.s32 0, %v225
    %v227 = vrot.slane %v222, %v226
    %vm229 = vcmask 326656
    %v231 = vsel %vm229, %v216, 0
    %233 = vmatprep.subr.mxu0 0.0
    %234 = vmatpush1.msra.mxu0 %v217
    %235 = vmatprep.subr.mxu0 0.0
    %236 = vmatpush1.msra.mxu0 %v218
    %237 = vmatprep.subr.mxu0 0.0
    %238 = vmatpush1.msra.mxu0 %v219
    %239 = vmatprep.subr.mxu0 0.0
    %240 = vmatpush1.msra.mxu0 %v220
    %241 = vmatprep.subr.mxu0 0.0
    %242 = vmatpush1.msra.mxu0 %v221
    %243 = vmatprep.subr.mxu0 0.0
    %244 = vmatpush1.msra.mxu0 0.0
    %245 = vmatprep.subr.mxu0 0.0
    %246 = vmatpush1.msra.mxu0 0.0
    %247 = vmatprep.subr.mxu0 0.0
    %248 = vmatpush1.msra.mxu0 0.0
    %249 = vmatprep.subr.mxu0 0.0
    %250 = vmatpush1.msra.mxu0 0.0
    %251 = vmatprep.subr.mxu0 0.0
    %252 = vmatpush1.msra.mxu0 0.0
    %253 = vmatprep.subr.mxu0 0.0
    %254 = vmatpush1.msra.mxu0 0.0
    %255 = vmatprep.subr.mxu0 0.0
    %256 = vmatpush1.msra.mxu0 0.0
    %257 = vmatprep.subr.mxu0 0.0
    %258 = vmatpush1.msra.mxu0 0.0
    %259 = vmatprep.subr.mxu0 0.0
    %260 = vmatpush1.msra.mxu0 0.0
    %261 = vmatprep.subr.mxu0 0.0
    %262 = vmatpush1.msra.mxu0 0.0
    %263 = vmatprep.subr.mxu0 0.0
    %264 = vmatpush1.msra.mxu0 0.0
    %265 = vmatprep.subr.mxu0 0.0
    %266 = vmatpush1.msra.mxu0 0.0
    %267 = vmatprep.subr.mxu0 0.0
    %268 = vmatpush1.msra.mxu0 0.0
    %269 = vmatprep.subr.mxu0 0.0
    %270 = vmatpush1.msra.mxu0 0.0
    %271 = vmatprep.subr.mxu0 0.0
    %272 = vmatpush1.msra.mxu0 0.0
    %273 = vmatprep.subr.mxu0 0.0
    %274 = vmatpush1.msra.mxu0 0.0
    %275 = vmatprep.subr.mxu0 0.0
    %276 = vmatpush1.msra.mxu0 0.0
    %277 = vmatprep.subr.mxu0 0.0
    %278 = vmatpush1.msra.mxu0 0.0
    %279 = vmatprep.subr.mxu0 0.0
    %280 = vmatpush1.msra.mxu0 0.0
    %281 = vmatprep.subr.mxu0 0.0
    %282 = vmatpush1.msra.mxu0 0.0
    %283 = vmatprep.subr.mxu0 0.0
    %284 = vmatpush1.msra.mxu0 0.0
    %285 = vmatprep.subr.mxu0 0.0
    %286 = vmatpush1.msra.mxu0 0.0
    %287 = vmatprep.subr.mxu0 0.0
    %288 = vmatpush1.msra.mxu0 0.0
    %289 = vmatprep.subr.mxu0 0.0
    %290 = vmatpush1.msra.mxu0 0.0
    %291 = vmatprep.subr.mxu0 0.0
    %292 = vmatpush1.msra.mxu0 0.0
    %293 = vmatprep.subr.mxu0 0.0
    %294 = vmatpush1.msra.mxu0 0.0
    %295 = vmatprep.subr.mxu0 0.0
    %296 = vmatpush1.msra.mxu0 0.0
    %297 = vmatprep.mubr.f32.mxu0 0.0
    %298 = vmatmul.mubr.f32.gmra.mrb[0].mxu0 %v231
    %v299 = vpop.f32.mrb[0].mxu0
    %v300 = vadd.f32 %v227, %v299
    %v301 = vpop.f32.mrb[0].mxu0
    %302 = vdwg.mxu0
    %v303 = vxor.u32 %v300, 2147483648
    %v304 = vmul.f32 %v303, 1.442695
    %v305 = vpow.pop %v304
    %v306 = vadd.f32 %v305, 1.0
    %v307 = vrcp.pop %v306
    %v308 = vmul.f32 1.0, %v307
    %vm309 = vcmask 61440
    %310 = vst.msk [vmem:[#allocation2] sm:$0x1f] %vm309, %v308
    // Predicated region
    $region30: #{tpu_custom_call.1} parent=1 // pred_check
      _
    $region31: #{tpu_custom_call.1} parent=1 // pred_check_branch
      %312 = sbr.rel (0) target = $region33
    $region32: #{tpu_custom_call.1} parent=1 // pred_region
      %s314 = ssub.s32 128, 128
      %315 = vsyncadd [#allocation3], %s314
      %s317 = sshll.u32 [#allocation2], 4
      %s318 = int_to_ptr.vmem [resolvable:$true] %s317
      %320 = dma.vmem_to_hbm [thread:$0]  %s318, 128, %s7, [#allocation3]
    $region33: #{tpu_custom_call.1} parent=1 // pred_fallthru
      _
    // Predicated region
    $region34: #{tpu_custom_call.1} parent=1 // pred_check
      _
    $region35: #{tpu_custom_call.1} parent=1 // pred_check_branch
      %322 = sbr.rel (0) target = $region37
    $region36: #{tpu_custom_call.1} parent=1 // pred_region
      %323 = dma.done [#allocation3], 128
    $region37: #{tpu_custom_call.1} parent=1 // pred_fallthru
      _
    %324 = vsyncpa [#allocation3], 1

</llo_original>
